<compile_context>
chip_gen: v7x
topology: tpu7x:2x2x1
jax: 0.10.0
libtpu: 0.0.40
codegen_flags: <defaults>
</compile_context>

<pallas_src>
import functools

import jax
import jax.numpy as jnp
from jax.experimental import pallas as pl
from jax.experimental.pallas import tpu as pltpu

_F32 = jnp.float32
_BF16 = jnp.bfloat16

_NN = (((1,), (0,)), ((), ()))   # plain row-major matmul
_NT = (((1,), (1,)), ((), ()))   # contract last dim of both (q @ k^T)

# Grid-invariant blocks at/above this size are single-buffered (weights at
# ViT-Base scale would otherwise be double-buffered past v7x's 64 MiB VMEM).
_SINGLE_BUFFER_BYTES = 4 * 1024 * 1024


# ------------------------------ small helpers --------------------------------
def _split_f32(x):
    """Split an f32 array into bf16 (hi, lo) with hi + lo ~= x (~16-bit mantissa)."""
    hi = x.astype(_BF16)
    lo = (x - hi.astype(_F32)).astype(_BF16)
    return hi, lo


def _dot3(a_hi, a_lo, b_hi, b_lo, dims=_NN):
    """~f32-accurate matmul from pre-split bf16 operands (3 bf16 MXU passes)."""
    def dg(u, v):
        return jax.lax.dot_general(u, v, dims, preferred_element_type=_F32)
    return dg(a_hi, b_hi) + dg(a_hi, b_lo) + dg(a_lo, b_hi)


def _layernorm(x, gamma, beta, eps=1e-5):
    # two-pass (centered) variance: matches nn.LayerNorm, avoids E[x^2]-E[x]^2
    # cancellation.
    mean = jnp.mean(x, axis=-1, keepdims=True)
    xc = x - mean
    var = jnp.mean(xc * xc, axis=-1, keepdims=True)
    return xc * jax.lax.rsqrt(var + eps) * gamma + beta


def _erf(x):
    # Abramowitz & Stegun 7.1.26 (max abs err ~1.5e-7).  Exact divide on the EUP
    # (the approx reciprocal was dropped per the accuracy review).
    a1, a2, a3, a4, a5 = 0.254829592, -0.284496736, 1.421413741, -1.453152027, 1.061405429
    p = 0.3275911
    s = jnp.sign(x)
    ax = jnp.abs(x)
    t = 1.0 / (1.0 + p * ax)
    poly = ((((a5 * t + a4) * t + a3) * t + a2) * t + a1) * t
    return s * (1.0 - poly * jnp.exp(-ax * ax))


def _gelu_exact(x):
    return 0.5 * x * (1.0 + _erf(x * 0.7071067811865476))


# ----------------------- kernel 1: LN1 + per-head K/V ------------------------
def ln_kv_kernel(x_ref, mask_ref, g1_ref, b1_ref,
                 wk_hi_ref, wk_lo_ref, wv_hi_ref, wv_lo_ref,
                 y_ref, k_hi_ref, k_lo_ref, v_hi_ref, v_lo_ref):
    """y = LN1(x); per-head K/V = y_h @ Wk_h / Wv_h for this token tile.

    K/V rows of padded tokens are zeroed (no softmax -> padding would otherwise
    leak into every real token's output).  K/V are written pre-split into bf16
    (hi, lo) so the attention kernel never re-splits them per grid step.
    """
    dh = wk_hi_ref.shape[-1]
    x = x_ref[...].astype(_F32)
    y = _layernorm(x, g1_ref[...], b1_ref[...])
    y_ref[...] = y.astype(y_ref.dtype)

    mask = mask_ref[...]                       # (TN, 1): 1 = real token, 0 = pad
    # per-head activation slices, split ONCE and reused for both K and V.
    y1_hi, y1_lo = _split_f32(y[:, :dh])
    y2_hi, y2_lo = _split_f32(y[:, dh:])

    k1 = _dot3(y1_hi, y1_lo, wk_hi_ref[0], wk_lo_ref[0]) * mask
    k2 = _dot3(y2_hi, y2_lo, wk_hi_ref[1], wk_lo_ref[1]) * mask
    v1 = _dot3(y1_hi, y1_lo, wv_hi_ref[0], wv_lo_ref[0]) * mask
    v2 = _dot3(y2_hi, y2_lo, wv_hi_ref[1], wv_lo_ref[1]) * mask

    k1_hi, k1_lo = _split_f32(k1)
    k2_hi, k2_lo = _split_f32(k2)
    v1_hi, v1_lo = _split_f32(v1)
    v2_hi, v2_lo = _split_f32(v2)
    k_hi_ref[0] = k1_hi
    k_hi_ref[1] = k2_hi
    k_lo_ref[0] = k1_lo
    k_lo_ref[1] = k2_lo
    v_hi_ref[0] = v1_hi
    v_hi_ref[1] = v2_hi
    v_lo_ref[0] = v1_lo
    v_lo_ref[1] = v2_lo


# --------------- kernel 2: attention + LN2 + chunked MLP + residuals ---------
def attn_mlp_kernel(y_ref, k_hi_ref, k_lo_ref, v_hi_ref, v_lo_ref,
                    g2_ref, b2_ref, wq_hi_ref, wq_lo_ref,
                    wfc1_hi_ref, wfc1_lo_ref, wfc2_hi_ref, wfc2_lo_ref,
                    out_ref, *, hidden_chunk):
    dh = wq_hi_ref.shape[-1]
    y = y_ref[...].astype(_F32)                # (TN, D) post-LN1 tokens (residual)

    # ---- 2-head attention (no softmax, no 1/sqrt(d): matches the module) ----
    y1_hi, y1_lo = _split_f32(y[:, :dh])
    y2_hi, y2_lo = _split_f32(y[:, dh:])
    q1_hi, q1_lo = _split_f32(_dot3(y1_hi, y1_lo, wq_hi_ref[0], wq_lo_ref[0]))
    q2_hi, q2_lo = _split_f32(_dot3(y2_hi, y2_lo, wq_hi_ref[1], wq_lo_ref[1]))

    sc1 = _dot3(q1_hi, q1_lo, k_hi_ref[0], k_lo_ref[0], dims=_NT)   # (TN, Npad)
    sc2 = _dot3(q2_hi, q2_lo, k_hi_ref[1], k_lo_ref[1], dims=_NT)
    sc1_hi, sc1_lo = _split_f32(sc1)
    sc2_hi, sc2_lo = _split_f32(sc2)
    a1 = _dot3(sc1_hi, sc1_lo, v_hi_ref[0], v_lo_ref[0])            # (TN, Dh)
    a2 = _dot3(sc2_hi, sc2_lo, v_hi_ref[1], v_lo_ref[1])
    attn = jnp.concatenate([a1, a2], axis=-1)                       # (TN, D)

    id2 = attn + y                             # residual with post-LN1 activations

    # -------- MLP, hidden dim processed in chunks (fc1 -> GELU -> fc2 acc) ----
    z = _layernorm(id2, g2_ref[...], b2_ref[...])
    z_hi, z_lo = _split_f32(z)
    d = y.shape[-1]
    h_total = wfc1_hi_ref.shape[-1]
    hc = hidden_chunk

    def mlp_chunk(off, acc):
        h = _dot3(z_hi, z_lo,
                  wfc1_hi_ref[:, pl.ds(off, hc)], wfc1_lo_ref[:, pl.ds(off, hc)])
        g = _gelu_exact(h)
        g_hi, g_lo = _split_f32(g)
        return acc + _dot3(g_hi, g_lo,
                           wfc2_hi_ref[pl.ds(off, hc), :], wfc2_lo_ref[pl.ds(off, hc), :])

    acc0 = jnp.zeros((y.shape[0], d), _F32)
    n_chunks = h_total // hc
    if n_chunks == 1:
        o = mlp_chunk(0, acc0)
    else:
        o = jax.lax.fori_loop(
            0, n_chunks,
            lambda c, acc: mlp_chunk(pl.multiple_of(c * hc, hc), acc),
            acc0, unroll=True)

    out_ref[...] = (o + id2).astype(out_ref.dtype)


# --------------------------- parameter preparation ---------------------------
def prepare_params(params):
    """One-time packing of PyTorch-convention (out, in) weights.

    Transposes to (in, out), stacks the two heads, and pre-splits every weight
    into bf16 (hi, lo) so the kernels never cast / split weights per grid step.
    Call once at parameter-setup time, NOT per forward call.
    """
    D = params["ln1_g"].shape[0]

    def ps(w):
        return _split_f32(jnp.asarray(w, _F32))

    wq_hi, wq_lo = ps(jnp.stack([params["wq1"].T, params["wq2"].T]))     # (2, Dh, Dh)
    wk_hi, wk_lo = ps(jnp.stack([params["wk1"].T, params["wk2"].T]))
    wv_hi, wv_lo = ps(jnp.stack([params["wv1"].T, params["wv2"].T]))
    wfc1_hi, wfc1_lo = ps(params["wfc1"].T)                              # (D, H)
    wfc2_hi, wfc2_lo = ps(params["wfc2"].T)                              # (H, D)
    return dict(
        g1=params["ln1_g"].reshape(1, D).astype(_F32),
        b1=params["ln1_b"].reshape(1, D).astype(_F32),
        g2=params["ln2_g"].reshape(1, D).astype(_F32),
        b2=params["ln2_b"].reshape(1, D).astype(_F32),
        wq_hi=wq_hi, wq_lo=wq_lo, wk_hi=wk_hi, wk_lo=wk_lo,
        wv_hi=wv_hi, wv_lo=wv_lo,
        wfc1_hi=wfc1_hi, wfc1_lo=wfc1_lo, wfc2_hi=wfc2_hi, wfc2_lo=wfc2_lo,
    )


def _vmem_limit_bytes():
    """Generation-aware VMEM budget: ~75% of physical, capped at 100 MiB
    (v5e/v6e -> 96 MiB of 128; v7x -> 48 MiB of 64); conservative fallback."""
    try:
        cap = getattr(pltpu.get_tpu_info(), "vmem_capacity_bytes", None)
    except Exception:
        cap = None
    if not cap:
        return 48 * 1024 * 1024
    return int(min(cap * 3 // 4, 100 * 1024 * 1024))


def _const_spec(arr):
    """Grid-invariant block covering the whole array.  Large (weight) blocks are
    single-buffered so ViT-Base-scale weights also fit v7x's 64 MiB VMEM."""
    nd = arr.ndim
    kwargs = {}
    if arr.size * arr.dtype.itemsize >= _SINGLE_BUFFER_BYTES:
        kwargs["pipeline_mode"] = pl.Buffered(1)
    return pl.BlockSpec(tuple(arr.shape), lambda i, _n=nd: (0,) * _n, **kwargs)


# ---------------------------------- wrapper -----------------------------------
def vit_one_layer(x, prep, *, token_tile=128, hidden_chunk=512):
    """x: (1, N, D) float32; prep: output of prepare_params (built once)."""
    B, N, D = x.shape
    assert B == 1, "module semantics (reshape/squeeze) require batch == 1"
    Dh = prep["wq_hi"].shape[-1]
    assert 2 * Dh == D, "this module is hard-wired to 2 heads (D = 2 * Dh)"
    H = prep["wfc1_hi"].shape[-1]
    hc = hidden_chunk if (H % hidden_chunk == 0) else H

    x2d = x[0]
    TN = token_tile if N > token_tile else N
    n_pad = int(pl.cdiv(N, TN)) * TN
    if n_pad != N:
        x2d = jnp.pad(x2d, ((0, n_pad - N), (0, 0)))
    grid = (n_pad // TN,)
    # 1.0 for real tokens, 0.0 for padding (zeroes padded K/V rows in kernel 1).
    mask = (jnp.arange(n_pad) < N).astype(_F32).reshape(n_pad, 1)

    cparams = pltpu.CompilerParams(
        dimension_semantics=("parallel",),
        vmem_limit_bytes=_vmem_limit_bytes())
    # TODO(synk): when the grid degenerates to 1 (N <= token_tile) on v7x, halve
    # the token tile or add a head / MLP-chunk grid axis so the 2nd TC has work.

    row_spec = pl.BlockSpec((TN, D), lambda i: (i, 0))
    head_spec = pl.BlockSpec((2, TN, Dh), lambda i: (0, i, 0))

    # --- call 1: LN1 + per-head K/V over ALL tokens (runs once, not per tile) ---
    y2d, k_hi, k_lo, v_hi, v_lo = pl.pallas_call(
        ln_kv_kernel,
        grid=grid,
        in_specs=[row_spec,
                  pl.BlockSpec((TN, 1), lambda i: (i, 0)),
                  _const_spec(prep["g1"]), _const_spec(prep["b1"]),
                  _const_spec(prep["wk_hi"]), _const_spec(prep["wk_lo"]),
                  _const_spec(prep["wv_hi"]), _const_spec(prep["wv_lo"])],
        out_specs=(row_spec, head_spec, head_spec, head_spec, head_spec),
        out_shape=(jax.ShapeDtypeStruct((n_pad, D), _F32),
                   jax.ShapeDtypeStruct((2, n_pad, Dh), _BF16),
                   jax.ShapeDtypeStruct((2, n_pad, Dh), _BF16),
                   jax.ShapeDtypeStruct((2, n_pad, Dh), _BF16),
                   jax.ShapeDtypeStruct((2, n_pad, Dh), _BF16)),
        compiler_params=cparams,
    )(x2d, mask, prep["g1"], prep["b1"],
      prep["wk_hi"], prep["wk_lo"], prep["wv_hi"], prep["wv_lo"])

    # --- call 2: token-tiled attention + LN2 + chunked MLP (+ residuals) ---
    out2d = pl.pallas_call(
        functools.partial(attn_mlp_kernel, hidden_chunk=hc),
        grid=grid,
        in_specs=[row_spec,
                  _const_spec(k_hi), _const_spec(k_lo),
                  _const_spec(v_hi), _const_spec(v_lo),
                  _const_spec(prep["g2"]), _const_spec(prep["b2"]),
                  _const_spec(prep["wq_hi"]), _const_spec(prep["wq_lo"]),
                  _const_spec(prep["wfc1_hi"]), _const_spec(prep["wfc1_lo"]),
                  _const_spec(prep["wfc2_hi"]), _const_spec(prep["wfc2_lo"])],
        out_specs=row_spec,
        out_shape=jax.ShapeDtypeStruct((n_pad, D), x.dtype),
        compiler_params=cparams,
    )(y2d, k_hi, k_lo, v_hi, v_lo, prep["g2"], prep["b2"],
      prep["wq_hi"], prep["wq_lo"],
      prep["wfc1_hi"], prep["wfc1_lo"], prep["wfc2_hi"], prep["wfc2_lo"])

    return out2d[:N][None]   # (1, N, D)


# ---------------- pure-JAX reference (mirrors the PyTorch forward) ----------------
def vit_ref(x, params):
    def ln(t, g, b, eps=1e-5):
        m = t.mean(-1, keepdims=True)
        v = ((t - m) ** 2).mean(-1, keepdims=True)
        return (t - m) / jnp.sqrt(v + eps) * g + b

    D = x.shape[-1]
    Dh = D // 2
    lin = lambda t, w: jnp.einsum("...i,oi->...o", t, w, precision="highest")

    y = ln(x, params["ln1_g"], params["ln1_b"])
    id1 = y
    y1, y2 = y[..., :Dh], y[..., Dh:]
    q1, k1, v1 = lin(y1, params["wq1"]), lin(y1, params["wk1"]), lin(y1, params["wv1"])
    q2, k2, v2 = lin(y2, params["wq2"]), lin(y2, params["wk2"]), lin(y2, params["wv2"])
    sc1 = jnp.einsum("bnd,bmd->bnm", q1, k1, precision="highest")
    sc2 = jnp.einsum("bnd,bmd->bnm", q2, k2, precision="highest")
    a1 = jnp.einsum("bnm,bmd->bnd", sc1, v1, precision="highest")
    a2 = jnp.einsum("bnm,bmd->bnd", sc2, v2, precision="highest")
    attn = jnp.concatenate([a1, a2], axis=-1)[0]      # squeeze -> (N, D)
    id2 = attn + id1                                  # broadcast back to (1, N, D)
    z = ln(id2, params["ln2_g"], params["ln2_b"])
    h = lin(z, params["wfc1"])
    g = jax.nn.gelu(h, approximate=False)
    o = lin(g, params["wfc2"])
    return o + id2


if __name__ == "__main__":
    def make_params(key, D, head, H):
        Dh = D // head
        ks = jax.random.split(key, 8)

        def uinit(k, out_f, in_f):
            bound = 1.0 / (in_f ** 0.5)
            return jax.random.uniform(k, (out_f, in_f), jnp.float32, -bound, bound)

        return dict(
            ln1_g=jnp.ones((D,), _F32), ln1_b=jnp.zeros((D,), _F32),
            ln2_g=jnp.ones((D,), _F32), ln2_b=jnp.zeros((D,), _F32),
            wq1=uinit(ks[0], Dh, Dh), wk1=uinit(ks[1], Dh, Dh), wv1=uinit(ks[2], Dh, Dh),
            wq2=uinit(ks[3], Dh, Dh), wk2=uinit(ks[4], Dh, Dh), wv2=uinit(ks[5], Dh, Dh),
            wfc1=uinit(ks[6], H, D), wfc2=uinit(ks[7], D, H),
        )

    key = jax.random.PRNGKey(0)
    k_small, k_pad, kx1, kx2 = jax.random.split(key, 4)

    # 1) toy NeuroSIM shape: N=8 tokens, D=32, 2 heads, MLP hidden 64 (grid of 1).
    D, N, head, H = 32, 8, 2, 64
    params = make_params(k_small, D, head, H)
    x = jax.random.normal(kx1, (1, N, D), _F32)
    prep = prepare_params(params)            # one-time weight packing / pre-split
    out = jax.block_until_ready(vit_one_layer(x, prep))
    ref = vit_ref(x, params)
    assert out.shape == (1, N, D), out.shape
    assert bool(jnp.all(jnp.isfinite(out)))
    assert bool(jnp.allclose(out, ref, atol=1e-3, rtol=1e-3)), "toy-shape mismatch"

    # 2) padded / multi-tile path: N=24 with token_tile=16 -> grid=2 + padding,
    #    lane-aligned heads (Dh=128) and a 2-chunk MLP (H=1024, chunk=512).
    D2, N2, H2 = 256, 24, 1024
    params2 = make_params(k_pad, D2, head, H2)
    x2 = jax.random.normal(kx2, (1, N2, D2), _F32)
    prep2 = prepare_params(params2)
    out2 = jax.block_until_ready(
        vit_one_layer(x2, prep2, token_tile=16, hidden_chunk=512))
    ref2 = vit_ref(x2, params2)
    assert out2.shape == (1, N2, D2), out2.shape
    assert bool(jnp.all(jnp.isfinite(out2)))
    assert bool(jnp.allclose(out2, ref2, atol=1e-2, rtol=1e-3)), "padded-path mismatch"

    print("KERNEL_OK")
</pallas_src>

<mosaic_0001>
module attributes {stable_mosaic.version = 11 : i64} {
  func.func @ln_kv_kernel(%arg0: i32, %arg1: memref<8x32xf32, #tpu.memory_space<vmem>>, %arg2: memref<8x1xf32, #tpu.memory_space<vmem>>, %arg3: memref<1x32xf32, #tpu.memory_space<vmem>>, %arg4: memref<1x32xf32, #tpu.memory_space<vmem>>, %arg5: memref<2x16x16xbf16, #tpu.memory_space<vmem>>, %arg6: memref<2x16x16xbf16, #tpu.memory_space<vmem>>, %arg7: memref<2x16x16xbf16, #tpu.memory_space<vmem>>, %arg8: memref<2x16x16xbf16, #tpu.memory_space<vmem>>, %arg9: memref<8x32xf32, #tpu.memory_space<vmem>>, %arg10: memref<2x8x16xbf16, #tpu.memory_space<vmem>>, %arg11: memref<2x8x16xbf16, #tpu.memory_space<vmem>>, %arg12: memref<2x8x16xbf16, #tpu.memory_space<vmem>>, %arg13: memref<2x8x16xbf16, #tpu.memory_space<vmem>>) attributes {dimension_semantics = [#tpu.dimension_semantics<parallel>], iteration_bounds = array<i64: 1>, scalar_prefetch = 0 : i64, scratch_operands = 0 : i64, tpu.core_type = #tpu.core_type<tc>, window_params = [{transform_indices = @transform_0, window_bounds = array<i64: 8, 32>}, {transform_indices = @transform_1, window_bounds = array<i64: 8, 1>}, {pipeline_mode = #tpu.pipeline_mode<synchronous>, transform_indices = @transform_2, window_bounds = array<i64: 1, 32>}, {pipeline_mode = #tpu.pipeline_mode<synchronous>, transform_indices = @transform_3, window_bounds = array<i64: 1, 32>}, {pipeline_mode = #tpu.pipeline_mode<synchronous>, transform_indices = @transform_4, window_bounds = array<i64: 2, 16, 16>}, {pipeline_mode = #tpu.pipeline_mode<synchronous>, transform_indices = @transform_5, window_bounds = array<i64: 2, 16, 16>}, {pipeline_mode = #tpu.pipeline_mode<synchronous>, transform_indices = @transform_6, window_bounds = array<i64: 2, 16, 16>}, {pipeline_mode = #tpu.pipeline_mode<synchronous>, transform_indices = @transform_7, window_bounds = array<i64: 2, 16, 16>}, {transform_indices = @transform_8, window_bounds = array<i64: 8, 32>}, {transform_indices = @transform_9, window_bounds = array<i64: 2, 8, 16>}, {transform_indices = @transform_10, window_bounds = array<i64: 2, 8, 16>}, {transform_indices = @transform_11, window_bounds = array<i64: 2, 8, 16>}, {transform_indices = @transform_12, window_bounds = array<i64: 2, 8, 16>}]} {
    %c0 = arith.constant 0 : index
    %c0_0 = arith.constant 0 : index
    %0 = vector.load %arg1[%c0, %c0_0] : memref<8x32xf32, #tpu.memory_space<vmem>>, vector<8x32xf32>
    %c0_1 = arith.constant 0 : index
    %c0_2 = arith.constant 0 : index
    %1 = vector.load %arg3[%c0_1, %c0_2] : memref<1x32xf32, #tpu.memory_space<vmem>>, vector<1x32xf32>
    %c0_3 = arith.constant 0 : index
    %c0_4 = arith.constant 0 : index
    %2 = vector.load %arg4[%c0_3, %c0_4] : memref<1x32xf32, #tpu.memory_space<vmem>>, vector<1x32xf32>
    %cst = arith.constant dense<0.000000e+00> : vector<8xf32>
    %3 = vector.multi_reduction <add>, %0, %cst [1] : vector<8x32xf32> to vector<8xf32>
    %4 = vector.shape_cast %3 : vector<8xf32> to vector<8x1xf32>
    %cst_5 = arith.constant 3.200000e+01 : f32
    %5 = vector.broadcast %cst_5 : f32 to vector<8x1xf32>
    %6 = arith.divf %4, %5 : vector<8x1xf32>
    %7 = vector.broadcast %6 : vector<8x1xf32> to vector<8x32xf32>
    %8 = arith.subf %0, %7 : vector<8x32xf32>
    %9 = arith.mulf %8, %8 : vector<8x32xf32>
    %cst_6 = arith.constant dense<0.000000e+00> : vector<8xf32>
    %10 = vector.multi_reduction <add>, %9, %cst_6 [1] : vector<8x32xf32> to vector<8xf32>
    %11 = vector.shape_cast %10 : vector<8xf32> to vector<8x1xf32>
    %cst_7 = arith.constant 3.200000e+01 : f32
    %12 = vector.broadcast %cst_7 : f32 to vector<8x1xf32>
    %13 = arith.divf %11, %12 : vector<8x1xf32>
    %cst_8 = arith.constant 9.99999974E-6 : f32
    %14 = vector.broadcast %cst_8 : f32 to vector<8x1xf32>
    %15 = arith.addf %13, %14 : vector<8x1xf32>
    %16 = math.rsqrt %15 : vector<8x1xf32>
    %17 = vector.broadcast %16 : vector<8x1xf32> to vector<8x32xf32>
    %18 = arith.mulf %8, %17 : vector<8x32xf32>
    %19 = vector.broadcast %1 : vector<1x32xf32> to vector<8x32xf32>
    %20 = arith.mulf %18, %19 : vector<8x32xf32>
    %21 = vector.broadcast %2 : vector<1x32xf32> to vector<8x32xf32>
    %22 = arith.addf %20, %21 : vector<8x32xf32>
    %c0_9 = arith.constant 0 : index
    %c0_10 = arith.constant 0 : index
    %23 = vector.load %arg9[%c0_9, %c0_10] : memref<8x32xf32, #tpu.memory_space<vmem>>, vector<8x32xf32>
    tpu.vector_store %arg9[%c0_9, %c0_10], %22 {strides = array<i32>} : memref<8x32xf32, #tpu.memory_space<vmem>>, vector<8x32xf32>,
    %c0_11 = arith.constant 0 : index
    %c0_12 = arith.constant 0 : index
    %24 = vector.load %arg2[%c0_11, %c0_12] : memref<8x1xf32, #tpu.memory_space<vmem>>, vector<8x1xf32>
    %25 = vector.extract_strided_slice %22 {offsets = [0, 0], sizes = [8, 16], strides = [1, 1]} : vector<8x32xf32> to vector<8x16xf32>
    %26 = arith.truncf %25 : vector<8x16xf32> to vector<8x16xbf16>
    %27 = arith.extf %26 : vector<8x16xbf16> to vector<8x16xf32>
    %28 = arith.subf %25, %27 : vector<8x16xf32>
    %29 = arith.truncf %28 : vector<8x16xf32> to vector<8x16xbf16>
    %30 = vector.extract_strided_slice %22 {offsets = [0, 16], sizes = [8, 16], strides = [1, 1]} : vector<8x32xf32> to vector<8x16xf32>
    %31 = arith.truncf %30 : vector<8x16xf32> to vector<8x16xbf16>
    %32 = arith.extf %31 : vector<8x16xbf16> to vector<8x16xf32>
    %33 = arith.subf %30, %32 : vector<8x16xf32>
    %34 = arith.truncf %33 : vector<8x16xf32> to vector<8x16xbf16>
    %c0_13 = arith.constant 0 : index
    %c0_14 = arith.constant 0 : index
    %c0_15 = arith.constant 0 : index
    %35 = vector.load %arg5[%c0_13, %c0_14, %c0_15] : memref<2x16x16xbf16, #tpu.memory_space<vmem>>, vector<1x16x16xbf16>
    %36 = vector.shape_cast %35 : vector<1x16x16xbf16> to vector<16x16xbf16>
    %c0_16 = arith.constant 0 : index
    %c0_17 = arith.constant 0 : index
    %c0_18 = arith.constant 0 : index
    %37 = vector.load %arg6[%c0_16, %c0_17, %c0_18] : memref<2x16x16xbf16, #tpu.memory_space<vmem>>, vector<1x16x16xbf16>
    %38 = vector.shape_cast %37 : vector<1x16x16xbf16> to vector<16x16xbf16>
    %cst_19 = arith.constant dense<0.000000e+00> : vector<8x16xf32>
    %39 = tpu.matmul %26, %36, %cst_19 {dimension_numbers = #tpu.dot_dimension_numbers<[1], [0], [0], [1], [0, 0, 1, 1], [], []>} : vector<8x16xbf16>, vector<16x16xbf16>, vector<8x16xf32> -> vector<8x16xf32>
    %cst_20 = arith.constant dense<0.000000e+00> : vector<8x16xf32>
    %40 = tpu.matmul %26, %38, %cst_20 {dimension_numbers = #tpu.dot_dimension_numbers<[1], [0], [0], [1], [0, 0, 1, 1], [], []>} : vector<8x16xbf16>, vector<16x16xbf16>, vector<8x16xf32> -> vector<8x16xf32>
    %41 = arith.addf %39, %40 : vector<8x16xf32>
    %cst_21 = arith.constant dense<0.000000e+00> : vector<8x16xf32>
    %42 = tpu.matmul %29, %36, %cst_21 {dimension_numbers = #tpu.dot_dimension_numbers<[1], [0], [0], [1], [0, 0, 1, 1], [], []>} : vector<8x16xbf16>, vector<16x16xbf16>, vector<8x16xf32> -> vector<8x16xf32>
    %43 = arith.addf %41, %42 : vector<8x16xf32>
    %44 = vector.broadcast %24 : vector<8x1xf32> to vector<8x16xf32>
    %45 = arith.mulf %43, %44 : vector<8x16xf32>
    %c1 = arith.constant 1 : index
    %c0_22 = arith.constant 0 : index
    %c0_23 = arith.constant 0 : index
    %46 = vector.load %arg5[%c1, %c0_22, %c0_23] : memref<2x16x16xbf16, #tpu.memory_space<vmem>>, vector<1x16x16xbf16>
    %47 = vector.shape_cast %46 : vector<1x16x16xbf16> to vector<16x16xbf16>
    %c1_24 = arith.constant 1 : index
    %c0_25 = arith.constant 0 : index
    %c0_26 = arith.constant 0 : index
    %48 = vector.load %arg6[%c1_24, %c0_25, %c0_26] : memref<2x16x16xbf16, #tpu.memory_space<vmem>>, vector<1x16x16xbf16>
    %49 = vector.shape_cast %48 : vector<1x16x16xbf16> to vector<16x16xbf16>
    %cst_27 = arith.constant dense<0.000000e+00> : vector<8x16xf32>
    %50 = tpu.matmul %31, %47, %cst_27 {dimension_numbers = #tpu.dot_dimension_numbers<[1], [0], [0], [1], [0, 0, 1, 1], [], []>} : vector<8x16xbf16>, vector<16x16xbf16>, vector<8x16xf32> -> vector<8x16xf32>
    %cst_28 = arith.constant dense<0.000000e+00> : vector<8x16xf32>
    %51 = tpu.matmul %31, %49, %cst_28 {dimension_numbers = #tpu.dot_dimension_numbers<[1], [0], [0], [1], [0, 0, 1, 1], [], []>} : vector<8x16xbf16>, vector<16x16xbf16>, vector<8x16xf32> -> vector<8x16xf32>
    %52 = arith.addf %50, %51 : vector<8x16xf32>
    %cst_29 = arith.constant dense<0.000000e+00> : vector<8x16xf32>
    %53 = tpu.matmul %34, %47, %cst_29 {dimension_numbers = #tpu.dot_dimension_numbers<[1], [0], [0], [1], [0, 0, 1, 1], [], []>} : vector<8x16xbf16>, vector<16x16xbf16>, vector<8x16xf32> -> vector<8x16xf32>
    %54 = arith.addf %52, %53 : vector<8x16xf32>
    %55 = vector.broadcast %24 : vector<8x1xf32> to vector<8x16xf32>
    %56 = arith.mulf %54, %55 : vector<8x16xf32>
    %c0_30 = arith.constant 0 : index
    %c0_31 = arith.constant 0 : index
    %c0_32 = arith.constant 0 : index
    %57 = vector.load %arg7[%c0_30, %c0_31, %c0_32] : memref<2x16x16xbf16, #tpu.memory_space<vmem>>, vector<1x16x16xbf16>
    %58 = vector.shape_cast %57 : vector<1x16x16xbf16> to vector<16x16xbf16>
    %c0_33 = arith.constant 0 : index
    %c0_34 = arith.constant 0 : index
    %c0_35 = arith.constant 0 : index
    %59 = vector.load %arg8[%c0_33, %c0_34, %c0_35] : memref<2x16x16xbf16, #tpu.memory_space<vmem>>, vector<1x16x16xbf16>
    %60 = vector.shape_cast %59 : vector<1x16x16xbf16> to vector<16x16xbf16>
    %cst_36 = arith.constant dense<0.000000e+00> : vector<8x16xf32>
    %61 = tpu.matmul %26, %58, %cst_36 {dimension_numbers = #tpu.dot_dimension_numbers<[1], [0], [0], [1], [0, 0, 1, 1], [], []>} : vector<8x16xbf16>, vector<16x16xbf16>, vector<8x16xf32> -> vector<8x16xf32>
    %cst_37 = arith.constant dense<0.000000e+00> : vector<8x16xf32>
    %62 = tpu.matmul %26, %60, %cst_37 {dimension_numbers = #tpu.dot_dimension_numbers<[1], [0], [0], [1], [0, 0, 1, 1], [], []>} : vector<8x16xbf16>, vector<16x16xbf16>, vector<8x16xf32> -> vector<8x16xf32>
    %63 = arith.addf %61, %62 : vector<8x16xf32>
    %cst_38 = arith.constant dense<0.000000e+00> : vector<8x16xf32>
    %64 = tpu.matmul %29, %58, %cst_38 {dimension_numbers = #tpu.dot_dimension_numbers<[1], [0], [0], [1], [0, 0, 1, 1], [], []>} : vector<8x16xbf16>, vector<16x16xbf16>, vector<8x16xf32> -> vector<8x16xf32>
    %65 = arith.addf %63, %64 : vector<8x16xf32>
    %66 = vector.broadcast %24 : vector<8x1xf32> to vector<8x16xf32>
    %67 = arith.mulf %65, %66 : vector<8x16xf32>
    %c1_39 = arith.constant 1 : index
    %c0_40 = arith.constant 0 : index
    %c0_41 = arith.constant 0 : index
    %68 = vector.load %arg7[%c1_39, %c0_40, %c0_41] : memref<2x16x16xbf16, #tpu.memory_space<vmem>>, vector<1x16x16xbf16>
    %69 = vector.shape_cast %68 : vector<1x16x16xbf16> to vector<16x16xbf16>
    %c1_42 = arith.constant 1 : index
    %c0_43 = arith.constant 0 : index
    %c0_44 = arith.constant 0 : index
    %70 = vector.load %arg8[%c1_42, %c0_43, %c0_44] : memref<2x16x16xbf16, #tpu.memory_space<vmem>>, vector<1x16x16xbf16>
    %71 = vector.shape_cast %70 : vector<1x16x16xbf16> to vector<16x16xbf16>
    %cst_45 = arith.constant dense<0.000000e+00> : vector<8x16xf32>
    %72 = tpu.matmul %31, %69, %cst_45 {dimension_numbers = #tpu.dot_dimension_numbers<[1], [0], [0], [1], [0, 0, 1, 1], [], []>} : vector<8x16xbf16>, vector<16x16xbf16>, vector<8x16xf32> -> vector<8x16xf32>
    %cst_46 = arith.constant dense<0.000000e+00> : vector<8x16xf32>
    %73 = tpu.matmul %31, %71, %cst_46 {dimension_numbers = #tpu.dot_dimension_numbers<[1], [0], [0], [1], [0, 0, 1, 1], [], []>} : vector<8x16xbf16>, vector<16x16xbf16>, vector<8x16xf32> -> vector<8x16xf32>
    %74 = arith.addf %72, %73 : vector<8x16xf32>
    %cst_47 = arith.constant dense<0.000000e+00> : vector<8x16xf32>
    %75 = tpu.matmul %34, %69, %cst_47 {dimension_numbers = #tpu.dot_dimension_numbers<[1], [0], [0], [1], [0, 0, 1, 1], [], []>} : vector<8x16xbf16>, vector<16x16xbf16>, vector<8x16xf32> -> vector<8x16xf32>
    %76 = arith.addf %74, %75 : vector<8x16xf32>
    %77 = vector.broadcast %24 : vector<8x1xf32> to vector<8x16xf32>
    %78 = arith.mulf %76, %77 : vector<8x16xf32>
    %79 = arith.truncf %45 : vector<8x16xf32> to vector<8x16xbf16>
    %80 = arith.extf %79 : vector<8x16xbf16> to vector<8x16xf32>
    %81 = arith.subf %45, %80 : vector<8x16xf32>
    %82 = arith.truncf %81 : vector<8x16xf32> to vector<8x16xbf16>
    %83 = arith.truncf %56 : vector<8x16xf32> to vector<8x16xbf16>
    %84 = arith.extf %83 : vector<8x16xbf16> to vector<8x16xf32>
    %85 = arith.subf %56, %84 : vector<8x16xf32>
    %86 = arith.truncf %85 : vector<8x16xf32> to vector<8x16xbf16>
    %87 = arith.truncf %67 : vector<8x16xf32> to vector<8x16xbf16>
    %88 = arith.extf %87 : vector<8x16xbf16> to vector<8x16xf32>
    %89 = arith.subf %67, %88 : vector<8x16xf32>
    %90 = arith.truncf %89 : vector<8x16xf32> to vector<8x16xbf16>
    %91 = arith.truncf %78 : vector<8x16xf32> to vector<8x16xbf16>
    %92 = arith.extf %91 : vector<8x16xbf16> to vector<8x16xf32>
    %93 = arith.subf %78, %92 : vector<8x16xf32>
    %94 = arith.truncf %93 : vector<8x16xf32> to vector<8x16xbf16>
    %c0_48 = arith.constant 0 : index
    %c0_49 = arith.constant 0 : index
    %c0_50 = arith.constant 0 : index
    %95 = vector.load %arg10[%c0_48, %c0_49, %c0_50] : memref<2x8x16xbf16, #tpu.memory_space<vmem>>, vector<1x8x16xbf16>
    %96 = vector.shape_cast %95 : vector<1x8x16xbf16> to vector<8x16xbf16>
    %97 = vector.shape_cast %79 : vector<8x16xbf16> to vector<1x8x16xbf16>
    tpu.vector_store %arg10[%c0_48, %c0_49, %c0_50], %97 {strides = array<i32>} : memref<2x8x16xbf16, #tpu.memory_space<vmem>>, vector<1x8x16xbf16>,
    %c1_51 = arith.constant 1 : index
    %c0_52 = arith.constant 0 : index
    %c0_53 = arith.constant 0 : index
    %98 = vector.load %arg10[%c1_51, %c0_52, %c0_53] : memref<2x8x16xbf16, #tpu.memory_space<vmem>>, vector<1x8x16xbf16>
    %99 = vector.shape_cast %98 : vector<1x8x16xbf16> to vector<8x16xbf16>
    %100 = vector.shape_cast %83 : vector<8x16xbf16> to vector<1x8x16xbf16>
    tpu.vector_store %arg10[%c1_51, %c0_52, %c0_53], %100 {strides = array<i32>} : memref<2x8x16xbf16, #tpu.memory_space<vmem>>, vector<1x8x16xbf16>,
    %c0_54 = arith.constant 0 : index
    %c0_55 = arith.constant 0 : index
    %c0_56 = arith.constant 0 : index
    %101 = vector.load %arg11[%c0_54, %c0_55, %c0_56] : memref<2x8x16xbf16, #tpu.memory_space<vmem>>, vector<1x8x16xbf16>
    %102 = vector.shape_cast %101 : vector<1x8x16xbf16> to vector<8x16xbf16>
    %103 = vector.shape_cast %82 : vector<8x16xbf16> to vector<1x8x16xbf16>
    tpu.vector_store %arg11[%c0_54, %c0_55, %c0_56], %103 {strides = array<i32>} : memref<2x8x16xbf16, #tpu.memory_space<vmem>>, vector<1x8x16xbf16>,
    %c1_57 = arith.constant 1 : index
    %c0_58 = arith.constant 0 : index
    %c0_59 = arith.constant 0 : index
    %104 = vector.load %arg11[%c1_57, %c0_58, %c0_59] : memref<2x8x16xbf16, #tpu.memory_space<vmem>>, vector<1x8x16xbf16>
    %105 = vector.shape_cast %104 : vector<1x8x16xbf16> to vector<8x16xbf16>
    %106 = vector.shape_cast %86 : vector<8x16xbf16> to vector<1x8x16xbf16>
    tpu.vector_store %arg11[%c1_57, %c0_58, %c0_59], %106 {strides = array<i32>} : memref<2x8x16xbf16, #tpu.memory_space<vmem>>, vector<1x8x16xbf16>,
    %c0_60 = arith.constant 0 : index
    %c0_61 = arith.constant 0 : index
    %c0_62 = arith.constant 0 : index
    %107 = vector.load %arg12[%c0_60, %c0_61, %c0_62] : memref<2x8x16xbf16, #tpu.memory_space<vmem>>, vector<1x8x16xbf16>
    %108 = vector.shape_cast %107 : vector<1x8x16xbf16> to vector<8x16xbf16>
    %109 = vector.shape_cast %87 : vector<8x16xbf16> to vector<1x8x16xbf16>
    tpu.vector_store %arg12[%c0_60, %c0_61, %c0_62], %109 {strides = array<i32>} : memref<2x8x16xbf16, #tpu.memory_space<vmem>>, vector<1x8x16xbf16>,
    %c1_63 = arith.constant 1 : index
    %c0_64 = arith.constant 0 : index
    %c0_65 = arith.constant 0 : index
    %110 = vector.load %arg12[%c1_63, %c0_64, %c0_65] : memref<2x8x16xbf16, #tpu.memory_space<vmem>>, vector<1x8x16xbf16>
    %111 = vector.shape_cast %110 : vector<1x8x16xbf16> to vector<8x16xbf16>
    %112 = vector.shape_cast %91 : vector<8x16xbf16> to vector<1x8x16xbf16>
    tpu.vector_store %arg12[%c1_63, %c0_64, %c0_65], %112 {strides = array<i32>} : memref<2x8x16xbf16, #tpu.memory_space<vmem>>, vector<1x8x16xbf16>,
    %c0_66 = arith.constant 0 : index
    %c0_67 = arith.constant 0 : index
    %c0_68 = arith.constant 0 : index
    %113 = vector.load %arg13[%c0_66, %c0_67, %c0_68] : memref<2x8x16xbf16, #tpu.memory_space<vmem>>, vector<1x8x16xbf16>
    %114 = vector.shape_cast %113 : vector<1x8x16xbf16> to vector<8x16xbf16>
    %115 = vector.shape_cast %90 : vector<8x16xbf16> to vector<1x8x16xbf16>
    tpu.vector_store %arg13[%c0_66, %c0_67, %c0_68], %115 {strides = array<i32>} : memref<2x8x16xbf16, #tpu.memory_space<vmem>>, vector<1x8x16xbf16>,
    %c1_69 = arith.constant 1 : index
    %c0_70 = arith.constant 0 : index
    %c0_71 = arith.constant 0 : index
    %116 = vector.load %arg13[%c1_69, %c0_70, %c0_71] : memref<2x8x16xbf16, #tpu.memory_space<vmem>>, vector<1x8x16xbf16>
    %117 = vector.shape_cast %116 : vector<1x8x16xbf16> to vector<8x16xbf16>
    %118 = vector.shape_cast %94 : vector<8x16xbf16> to vector<1x8x16xbf16>
    tpu.vector_store %arg13[%c1_69, %c0_70, %c0_71], %118 {strides = array<i32>} : memref<2x8x16xbf16, #tpu.memory_space<vmem>>, vector<1x8x16xbf16>,
    return
  }
  func.func @transform_0(%arg0: i32) -> (i32, i32) {
    %c0_i32 = arith.constant 0 : i32
    %c0_i32_0 = arith.constant 0 : i32
    return %arg0, %c0_i32 : i32, i32
  }
  func.func @transform_1(%arg0: i32) -> (i32, i32) {
    %c0_i32 = arith.constant 0 : i32
    %c0_i32_0 = arith.constant 0 : i32
    return %arg0, %c0_i32 : i32, i32
  }
  func.func @transform_2(%arg0: i32) -> (i32, i32) {
    %c0_i32 = arith.constant 0 : i32
    %c0_i32_0 = arith.constant 0 : i32
    %c0_i32_1 = arith.constant 0 : i32
    return %c0_i32, %c0_i32_0 : i32, i32
  }
  func.func @transform_3(%arg0: i32) -> (i32, i32) {
    %c0_i32 = arith.constant 0 : i32
    %c0_i32_0 = arith.constant 0 : i32
    %c0_i32_1 = arith.constant 0 : i32
    return %c0_i32, %c0_i32_0 : i32, i32
  }
  func.func @transform_4(%arg0: i32) -> (i32, i32, i32) {
    %c0_i32 = arith.constant 0 : i32
    %c0_i32_0 = arith.constant 0 : i32
    %c0_i32_1 = arith.constant 0 : i32
    %c0_i32_2 = arith.constant 0 : i32
    return %c0_i32, %c0_i32_0, %c0_i32_1 : i32, i32, i32
  }
  func.func @transform_5(%arg0: i32) -> (i32, i32, i32) {
    %c0_i32 = arith.constant 0 : i32
    %c0_i32_0 = arith.constant 0 : i32
    %c0_i32_1 = arith.constant 0 : i32
    %c0_i32_2 = arith.constant 0 : i32
    return %c0_i32, %c0_i32_0, %c0_i32_1 : i32, i32, i32
  }
  func.func @transform_6(%arg0: i32) -> (i32, i32, i32) {
    %c0_i32 = arith.constant 0 : i32
    %c0_i32_0 = arith.constant 0 : i32
    %c0_i32_1 = arith.constant 0 : i32
    %c0_i32_2 = arith.constant 0 : i32
    return %c0_i32, %c0_i32_0, %c0_i32_1 : i32, i32, i32
  }
  func.func @transform_7(%arg0: i32) -> (i32, i32, i32) {
    %c0_i32 = arith.constant 0 : i32
    %c0_i32_0 = arith.constant 0 : i32
    %c0_i32_1 = arith.constant 0 : i32
    %c0_i32_2 = arith.constant 0 : i32
    return %c0_i32, %c0_i32_0, %c0_i32_1 : i32, i32, i32
  }
  func.func @transform_8(%arg0: i32) -> (i32, i32) {
    %c0_i32 = arith.constant 0 : i32
    %c0_i32_0 = arith.constant 0 : i32
    return %arg0, %c0_i32 : i32, i32
  }
  func.func @transform_9(%arg0: i32) -> (i32, i32, i32) {
    %c0_i32 = arith.constant 0 : i32
    %c0_i32_0 = arith.constant 0 : i32
    %c0_i32_1 = arith.constant 0 : i32
    return %c0_i32, %arg0, %c0_i32_0 : i32, i32, i32
  }
  func.func @transform_10(%arg0: i32) -> (i32, i32, i32) {
    %c0_i32 = arith.constant 0 : i32
    %c0_i32_0 = arith.constant 0 : i32
    %c0_i32_1 = arith.constant 0 : i32
    return %c0_i32, %arg0, %c0_i32_0 : i32, i32, i32
  }
  func.func @transform_11(%arg0: i32) -> (i32, i32, i32) {
    %c0_i32 = arith.constant 0 : i32
    %c0_i32_0 = arith.constant 0 : i32
    %c0_i32_1 = arith.constant 0 : i32
    return %c0_i32, %arg0, %c0_i32_0 : i32, i32, i32
  }
  func.func @transform_12(%arg0: i32) -> (i32, i32, i32) {
    %c0_i32 = arith.constant 0 : i32
    %c0_i32_0 = arith.constant 0 : i32
    %c0_i32_1 = arith.constant 0 : i32
    return %c0_i32, %arg0, %c0_i32_0 : i32, i32, i32
  }
}

</mosaic_0001>

<llo_original>
// kernel: tpu_custom_call.1
$region0: #{tpu_custom_call.1}
  #allocation0 [shape = 'u32[]', space=smem, size = 0x4, offset = 0x4, fixed_abs, tag = 'smem constant byte address 0x4 - core index']
  #allocation1 [shape = 'u32[144,128]{1,0:T(1,128)}', space=vmem, size = 0x12000, scoped, tag = 'internal scratch']
  %s0 = inlined_call_operand.hbm [shape: f32[8,32], index: 0, kind: input, shape index: {}]
  %s1 = inlined_call_operand.vmem [shape: f32[8,1], index: 1, kind: input, shape index: {}]
  %s2 = inlined_call_operand.vmem [shape: f32[1,32], index: 2, kind: input, shape index: {}]
  %s3 = inlined_call_operand.vmem [shape: f32[1,32], index: 3, kind: input, shape index: {}]
  %s4 = inlined_call_operand.vmem [shape: bf16[2,16,16], index: 4, kind: input, shape index: {}]
  %s5 = inlined_call_operand.hbm [shape: bf16[2,16,16], index: 5, kind: input, shape index: {}]
  %s6 = inlined_call_operand.hbm [shape: bf16[2,16,16], index: 6, kind: input, shape index: {}]
  %s7 = inlined_call_operand.vmem [shape: bf16[2,16,16], index: 7, kind: input, shape index: {}]
  %s8 = inlined_call_operand.hbm [shape: f32[8,32], index: 8, kind: output, shape index: {0}]
  %s9 = inlined_call_operand.hbm [shape: bf16[2,8,16], index: 9, kind: output, shape index: {1}]
  %s10 = inlined_call_operand.hbm [shape: bf16[2,8,16], index: 10, kind: output, shape index: {2}]
  %s11 = inlined_call_operand.hbm [shape: bf16[2,8,16], index: 11, kind: output, shape index: {3}]
  %s12 = inlined_call_operand.hbm [shape: bf16[2,8,16], index: 12, kind: output, shape index: {4}]
  %13 = xla_tuple %s8, %s9, %s10, %s11, %s12
  %s14 = sld [smem:[#allocation0]]
  $region86: #{tpu_custom_call.1} parent=0
    _
  %s16 = ssub.s32 1, %s14
  %s17 = scalar_select 0, %s16, %s14
  $region1: #{tpu_custom_call.1} parent=0
    #allocation2 [shape = 'u8[4096]{0}', space=vmem, size = 0x1000, scoped, tag = 'input window, operand 0, single buffered']
    #allocation3 [shape = 's32[1]{0}', space=sflag, size = 0x4, scoped, tag = 'scoped memory for tpu_custom_call.1']
    #allocation4 [shape = 's32[1]{0}', space=sflag, size = 0x4, scoped, tag = 'scoped memory for tpu_custom_call.1']
    #allocation5 [shape = 'u8[8192]{0}', space=vmem, size = 0x2000, scoped, tag = 'input window, operand 5, single buffered']
    #allocation6 [shape = 's32[1]{0}', space=sflag, size = 0x4, scoped, tag = 'scoped memory for tpu_custom_call.1']
    #allocation7 [shape = 'u8[8192]{0}', space=vmem, size = 0x2000, scoped, tag = 'input window, operand 6, single buffered']
    #allocation8 [shape = 'u8[4096]{0}', space=vmem, size = 0x1000, scoped, tag = 'output window, operand 0, single buffered']
    #allocation9 [shape = 'u8[4096]{0}', space=vmem, size = 0x1000, scoped, tag = 'output window, operand 1, single buffered']
    #allocation10 [shape = 's32[1]{0}', space=sflag, size = 0x4, scoped, tag = 'scoped memory for tpu_custom_call.1']
    #allocation11 [shape = 'u8[4096]{0}', space=vmem, size = 0x1000, scoped, tag = 'output window, operand 2, single buffered']
    #allocation12 [shape = 'u8[4096]{0}', space=vmem, size = 0x1000, scoped, tag = 'output window, operand 3, single buffered']
    #allocation13 [shape = 's32[1]{0}', space=sflag, size = 0x4, scoped, tag = 'scoped memory for tpu_custom_call.1']
    #allocation14 [shape = 'u8[4096]{0}', space=vmem, size = 0x1000, scoped, tag = 'output window, operand 4, single buffered']
    %18 = vsyncpa [#allocation3], 0
    %19 = vsyncpa [#allocation6], 0
    %20 = vsyncpa [#allocation4], 0
    %21 = vsyncpa [#allocation10], 0
    %22 = vsyncpa [#allocation13], 0
    // Predicated region
    $region2: #{tpu_custom_call.1} parent=1 // pred_check
      _
    $region3: #{tpu_custom_call.1} parent=1 // pred_check_branch
      %24 = sbr.rel (0) target = $region5
    $region4: #{tpu_custom_call.1} parent=1 // pred_region
      %s26 = ssub.s32 128, 128
      %27 = vsyncadd [#allocation3], %s26
      %s29 = sshll.u32 [#allocation2], 4
      %s30 = int_to_ptr.vmem [resolvable:$true] %s29
      %32 = dma.hbm_to_vmem [thread:$0]  %s0, 128, %s30, [#allocation3]
    $region5: #{tpu_custom_call.1} parent=1 // pred_fallthru
      _
    // Predicated region
    $region6: #{tpu_custom_call.1} parent=1 // pred_check
      _
    $region7: #{tpu_custom_call.1} parent=1 // pred_check_branch
      %34 = sbr.rel (0) target = $region9
    $region8: #{tpu_custom_call.1} parent=1 // pred_region
      _
    $region9: #{tpu_custom_call.1} parent=1 // pred_fallthru
      _
    // Predicated region
    $region10: #{tpu_custom_call.1} parent=1 // pred_check
      _
    $region11: #{tpu_custom_call.1} parent=1 // pred_check_branch
      %36 = sbr.rel (0) target = $region13
    $region12: #{tpu_custom_call.1} parent=1 // pred_region
      _
    $region13: #{tpu_custom_call.1} parent=1 // pred_fallthru
      _
    // Predicated region
    $region14: #{tpu_custom_call.1} parent=1 // pred_check
      _
    $region15: #{tpu_custom_call.1} parent=1 // pred_check_branch
      %38 = sbr.rel (0) target = $region17
    $region16: #{tpu_custom_call.1} parent=1 // pred_region
      _
    $region17: #{tpu_custom_call.1} parent=1 // pred_fallthru
      _
    // Predicated region
    $region18: #{tpu_custom_call.1} parent=1 // pred_check
      _
    $region19: #{tpu_custom_call.1} parent=1 // pred_check_branch
      %40 = sbr.rel (0) target = $region21
    $region20: #{tpu_custom_call.1} parent=1 // pred_region
      _
    $region21: #{tpu_custom_call.1} parent=1 // pred_fallthru
      _
    // Predicated region
    $region22: #{tpu_custom_call.1} parent=1 // pred_check
      _
    $region23: #{tpu_custom_call.1} parent=1 // pred_check_branch
      %42 = sbr.rel (0) target = $region25
    $region24: #{tpu_custom_call.1} parent=1 // pred_region
      %s44 = ssub.s32 256, 256
      %45 = vsyncadd [#allocation6], %s44
      %s46 = sshll.u32 [#allocation5], 4
      %s47 = int_to_ptr.vmem [resolvable:$true] %s46
      %52 = dma.hbm_to_vmem [thread:$0]  %s5, 256, %s47, [#allocation6], 64, 64, 4
    $region25: #{tpu_custom_call.1} parent=1 // pred_fallthru
      _
    // Predicated region
    $region26: #{tpu_custom_call.1} parent=1 // pred_check
      _
    $region27: #{tpu_custom_call.1} parent=1 // pred_check_branch
      %54 = sbr.rel (0) target = $region29
    $region28: #{tpu_custom_call.1} parent=1 // pred_region
      %s56 = ssub.s32 256, 256
      %57 = vsyncadd [#allocation6], %s56
      %s58 = sshll.u32 [#allocation7], 4
      %s59 = int_to_ptr.vmem [resolvable:$true] %s58
      %64 = dma.hbm_to_vmem [thread:$0]  %s6, 256, %s59, [#allocation6], 64, 64, 4
    $region29: #{tpu_custom_call.1} parent=1 // pred_fallthru
      _
    // Predicated region
    $region30: #{tpu_custom_call.1} parent=1 // pred_check
      _
    $region31: #{tpu_custom_call.1} parent=1 // pred_check_branch
      %66 = sbr.rel (0) target = $region33
    $region32: #{tpu_custom_call.1} parent=1 // pred_region
      _
    $region33: #{tpu_custom_call.1} parent=1 // pred_fallthru
      _
    // Predicated region
    $region34: #{tpu_custom_call.1} parent=1 // pred_check
      _
    $region35: #{tpu_custom_call.1} parent=1 // pred_check_branch
      %68 = sbr.rel (0) target = $region37
    $region36: #{tpu_custom_call.1} parent=1 // pred_region
      %69 = dma.done [#allocation3], 128
    $region37: #{tpu_custom_call.1} parent=1 // pred_fallthru
      _
    // Predicated region
    $region38: #{tpu_custom_call.1} parent=1 // pred_check
      _
    $region39: #{tpu_custom_call.1} parent=1 // pred_check_branch
      %71 = sbr.rel (0) target = $region41
    $region40: #{tpu_custom_call.1} parent=1 // pred_region
      %72 = dma.done [#allocation6], 256
    $region41: #{tpu_custom_call.1} parent=1 // pred_fallthru
      _
    // Predicated region
    $region42: #{tpu_custom_call.1} parent=1 // pred_check
      _
    $region43: #{tpu_custom_call.1} parent=1 // pred_check_branch
      %74 = sbr.rel (0) target = $region45
    $region44: #{tpu_custom_call.1} parent=1 // pred_region
      %75 = dma.done [#allocation6], 256
    $region45: #{tpu_custom_call.1} parent=1 // pred_fallthru
      _
    %v77 = vld [vmem:[#allocation2] sm:$0xff]
    %v78 = vld [vmem:[%s2] sm:$0x1]
    %v79 = vld [vmem:[%s3] sm:$0x1]
    %vm80 = vcmask 261120
    %v81 = vsel %vm80, %v77, 0.0
    %82 = vadd.xlane.f32.xlu0 %v81
    %v83 = vpop.xlane.xlu0 %82
    %v84 = vrcp.pop 32.0
    %v85 = vmul.f32 %v83, %v84
    %v86 = vsub.f32 %v77, %v85
    %v87 = vmul.f32 %v86, %v86
    %v88 = vsel %vm80, %v87, 0.0
    %89 = vadd.xlane.f32.xlu0 %v88
    %v90 = vpop.xlane.xlu0 %89
    %v91 = vmul.f32 %v90, %v84
    %v92 = vadd.f32 %v91, 1e-05
    %v93 = vrsqrt.pop %v92
    %v94 = vmul.f32 %v86, %v93
    %v96 = vlaneseq
    %v97 = vshrl.u32 %v96, 7
    %v98 = vsub.s32 0, %v97
    %v99 = vrot.slane %v78, %v98
    %v101 = vmul.f32 %v94, %v99
    %v103 = vlaneseq
    %v104 = vshrl.u32 %v103, 7
    %v105 = vsub.s32 0, %v104
    %v106 = vrot.slane %v79, %v105
    %v108 = vadd.f32 %v101, %v106
    %109 = vst.msk [vmem:[#allocation8] sm:$0xff] %vm80, %v108
    %v110 = vld [vmem:[%s1] sm:$0xff]
    %v111 = vpack.c.bf16 %v108, %v108
    %v112 = vunpack.c.l.bf16 %v111
    %v113 = vsub.f32 %v108, %v112
    %v114 = vpack.c.bf16 %v113, %v113
    %v115 = vld [vmem:[%s4] sm:$0xf]
    %v116 = vld [vmem:[%s4 + $0x4] sm:$0xf]
    %v117 = vld [vmem:[#allocation5] sm:$0xf]
    %v118 = vld [vmem:[#allocation5 + $0x4] sm:$0xf]
    %v121 = vunpack.c.l.b16 %v117
    %v122 = vunpack.c.l.b16 %v118
    %v123 = vpack.c.b16 %v122, %v121
    %vm125 = vcmask 130048
    %v127 = vsel %vm125, %v111, 0
    %129 = vmatprep.subr.bf16.mxu0 0
    %130 = vmatpush1.bf16.msra.mxu0 %v123
    %131 = vmatprep.subr.bf16.mxu0 0
    %132 = vmatpush1.bf16.msra.mxu0 0
    %133 = vmatprep.subr.bf16.mxu0 0
    %134 = vmatpush1.bf16.msra.mxu0 0
    %135 = vmatprep.subr.bf16.mxu0 0
    %136 = vmatpush1.bf16.msra.mxu0 0
    %137 = vmatprep.subr.bf16.mxu0 0
    %138 = vmatpush1.bf16.msra.mxu0 0
    %139 = vmatprep.subr.bf16.mxu0 0
    %140 = vmatpush1.bf16.msra.mxu0 0
    %141 = vmatprep.subr.bf16.mxu0 0
    %142 = vmatpush1.bf16.msra.mxu0 0
    %143 = vmatprep.subr.bf16.mxu0 0
    %144 = vmatpush1.bf16.msra.mxu0 0
    %145 = vmatprep.subr.bf16.mxu0 0
    %146 = vmatpush1.bf16.msra.mxu0 0
    %147 = vmatprep.subr.bf16.mxu0 0
    %148 = vmatpush1.bf16.msra.mxu0 0
    %149 = vmatprep.subr.bf16.mxu0 0
    %150 = vmatpush1.bf16.msra.mxu0 0
    %151 = vmatprep.subr.bf16.mxu0 0
    %152 = vmatpush1.bf16.msra.mxu0 0
    %153 = vmatprep.subr.bf16.mxu0 0
    %154 = vmatpush1.bf16.msra.mxu0 0
    %155 = vmatprep.subr.bf16.mxu0 0
    %156 = vmatpush1.bf16.msra.mxu0 0
    %157 = vmatprep.subr.bf16.mxu0 0
    %158 = vmatpush1.bf16.msra.mxu0 0
    %159 = vmatprep.subr.bf16.mxu0 0
    %160 = vmatpush1.bf16.msra.mxu0 0
    %161 = vmatprep.mubr.bf16.mxu0 0
    %162 = vmatmul.mubr.bf16.gmra.mrb[0].mxu0 %v127
    %v163 = vpop.f32.mrb[0].mxu0
    %v164 = vadd.f32 0.0, %v163
    %v165 = vpop.f32.mrb[0].mxu0
    %v166 = vpop.f32.mrb[0].mxu0
    %v167 = vpop.f32.mrb[0].mxu0
    %168 = vdwg.mxu0
    %v171 = vunpack.c.l.b16 %v115
    %v172 = vunpack.c.l.b16 %v116
    %v173 = vpack.c.b16 %v172, %v171
    %175 = vmatprep.subr.bf16.mxu0 0
    %176 = vmatpush1.bf16.msra.mxu0 %v173
    %177 = vmatprep.subr.bf16.mxu0 0
    %178 = vmatpush1.bf16.msra.mxu0 0
    %179 = vmatprep.subr.bf16.mxu0 0
    %180 = vmatpush1.bf16.msra.mxu0 0
    %181 = vmatprep.subr.bf16.mxu0 0
    %182 = vmatpush1.bf16.msra.mxu0 0
    %183 = vmatprep.subr.bf16.mxu0 0
    %184 = vmatpush1.bf16.msra.mxu0 0
    %185 = vmatprep.subr.bf16.mxu0 0
    %186 = vmatpush1.bf16.msra.mxu0 0
    %187 = vmatprep.subr.bf16.mxu0 0
    %188 = vmatpush1.bf16.msra.mxu0 0
    %189 = vmatprep.subr.bf16.mxu0 0
    %190 = vmatpush1.bf16.msra.mxu0 0
    %191 = vmatprep.subr.bf16.mxu0 0
    %192 = vmatpush1.bf16.msra.mxu0 0
    %193 = vmatprep.subr.bf16.mxu0 0
    %194 = vmatpush1.bf16.msra.mxu0 0
    %195 = vmatprep.subr.bf16.mxu0 0
    %196 = vmatpush1.bf16.msra.mxu0 0
    %197 = vmatprep.subr.bf16.mxu0 0
    %198 = vmatpush1.bf16.msra.mxu0 0
    %199 = vmatprep.subr.bf16.mxu0 0
    %200 = vmatpush1.bf16.msra.mxu0 0
    %201 = vmatprep.subr.bf16.mxu0 0
    %202 = vmatpush1.bf16.msra.mxu0 0
    %203 = vmatprep.subr.bf16.mxu0 0
    %204 = vmatpush1.bf16.msra.mxu0 0
    %205 = vmatprep.subr.bf16.mxu0 0
    %206 = vmatpush1.bf16.msra.mxu0 0
    %207 = vmatprep.mubr.bf16.mxu0 0
    %208 = vmatmul.mubr.bf16.gmra.mrb[0].mxu0 %v127
    %v209 = vpop.f32.mrb[0].mxu0
    %v210 = vadd.f32 %v164, %v209
    %v211 = vpop.f32.mrb[0].mxu0
    %v212 = vpop.f32.mrb[0].mxu0
    %v213 = vpop.f32.mrb[0].mxu0
    %214 = vdwg.mxu0
    %v216 = vsel %vm125, %v114, 0
    %218 = vmatprep.subr.bf16.mxu0 0
    %219 = vmatpush1.bf16.msra.mxu0 %v173
    %220 = vmatprep.subr.bf16.mxu0 0
    %221 = vmatpush1.bf16.msra.mxu0 0
    %222 = vmatprep.subr.bf16.mxu0 0
    %223 = vmatpush1.bf16.msra.mxu0 0
    %224 = vmatprep.subr.bf16.mxu0 0
    %225 = vmatpush1.bf16.msra.mxu0 0
    %226 = vmatprep.subr.bf16.mxu0 0
    %227 = vmatpush1.bf16.msra.mxu0 0
    %228 = vmatprep.subr.bf16.mxu0 0
    %229 = vmatpush1.bf16.msra.mxu0 0
    %230 = vmatprep.subr.bf16.mxu0 0
    %231 = vmatpush1.bf16.msra.mxu0 0
    %232 = vmatprep.subr.bf16.mxu0 0
    %233 = vmatpush1.bf16.msra.mxu0 0
    %234 = vmatprep.subr.bf16.mxu0 0
    %235 = vmatpush1.bf16.msra.mxu0 0
    %236 = vmatprep.subr.bf16.mxu0 0
    %237 = vmatpush1.bf16.msra.mxu0 0
    %238 = vmatprep.subr.bf16.mxu0 0
    %239 = vmatpush1.bf16.msra.mxu0 0
    %240 = vmatprep.subr.bf16.mxu0 0
    %241 = vmatpush1.bf16.msra.mxu0 0
    %242 = vmatprep.subr.bf16.mxu0 0
    %243 = vmatpush1.bf16.msra.mxu0 0
    %244 = vmatprep.subr.bf16.mxu0 0
    %245 = vmatpush1.bf16.msra.mxu0 0
    %246 = vmatprep.subr.bf16.mxu0 0
    %247 = vmatpush1.bf16.msra.mxu0 0
    %248 = vmatprep.subr.bf16.mxu0 0
    %249 = vmatpush1.bf16.msra.mxu0 0
    %250 = vmatprep.mubr.bf16.mxu0 0
    %251 = vmatmul.mubr.bf16.gmra.mrb[0].mxu0 %v216
    %v252 = vpop.f32.mrb[0].mxu0
    %v253 = vadd.f32 0.0, %v252
    %v254 = vpop.f32.mrb[0].mxu0
    %v255 = vpop.f32.mrb[0].mxu0
    %v256 = vpop.f32.mrb[0].mxu0
    %257 = vdwg.mxu0
    %v258 = vadd.f32 %v210, %v253
    %260 = vset.pattern.permute.xlu0 0
    %261 = vperm.xlu0 %260, %v110
    %v262 = vpop.permute.xlu0 %261
    %v264 = vmul.f32 %v258, %v262
    %s265 = scalar_lea.vmem %s4, 8
    %v266 = vld [vmem:[%s265] sm:$0xf]
    %v267 = vld [vmem:[%s265 + $0x4] sm:$0xf]
    %s268 = scalar_lea.vmem [#allocation5], 8
    %v269 = vld [vmem:[%s268] sm:$0xf]
    %v270 = vld [vmem:[%s268 + $0x4] sm:$0xf]
    %272 = vrot.lane.b32.xlu0 %v111, 112
    %v273 = vpop.permute.xlu0 %272
    %v276 = vunpack.c.l.b16 %v269
    %v277 = vunpack.c.l.b16 %v270
    %v278 = vpack.c.b16 %v277, %v276
    %v281 = vsel %vm125, %v273, 0
    %283 = vmatprep.subr.bf16.mxu0 0
    %284 = vmatpush1.bf16.msra.mxu0 %v278
    %285 = vmatprep.subr.bf16.mxu0 0
    %286 = vmatpush1.bf16.msra.mxu0 0
    %287 = vmatprep.subr.bf16.mxu0 0
    %288 = vmatpush1.bf16.msra.mxu0 0
    %289 = vmatprep.subr.bf16.mxu0 0
    %290 = vmatpush1.bf16.msra.mxu0 0
    %291 = vmatprep.subr.bf16.mxu0 0
    %292 = vmatpush1.bf16.msra.mxu0 0
    %293 = vmatprep.subr.bf16.mxu0 0
    %294 = vmatpush1.bf16.msra.mxu0 0
    %295 = vmatprep.subr.bf16.mxu0 0
    %296 = vmatpush1.bf16.msra.mxu0 0
    %297 = vmatprep.subr.bf16.mxu0 0
    %298 = vmatpush1.bf16.msra.mxu0 0
    %299 = vmatprep.subr.bf16.mxu0 0
    %300 = vmatpush1.bf16.msra.mxu0 0
    %301 = vmatprep.subr.bf16.mxu0 0
    %302 = vmatpush1.bf16.msra.mxu0 0
    %303 = vmatprep.subr.bf16.mxu0 0
    %304 = vmatpush1.bf16.msra.mxu0 0
    %305 = vmatprep.subr.bf16.mxu0 0
    %306 = vmatpush1.bf16.msra.mxu0 0
    %307 = vmatprep.subr.bf16.mxu0 0
    %308 = vmatpush1.bf16.msra.mxu0 0
    %309 = vmatprep.subr.bf16.mxu0 0
    %310 = vmatpush1.bf16.msra.mxu0 0
    %311 = vmatprep.subr.bf16.mxu0 0
    %312 = vmatpush1.bf16.msra.mxu0 0
    %313 = vmatprep.subr.bf16.mxu0 0
    %314 = vmatpush1.bf16.msra.mxu0 0
    %315 = vmatprep.mubr.bf16.mxu0 0
    %316 = vmatmul.mubr.bf16.gmra.mrb[0].mxu0 %v281
    %v317 = vpop.f32.mrb[0].mxu0
    %v318 = vadd.f32 0.0, %v317
    %v319 = vpop.f32.mrb[0].mxu0
    %v320 = vpop.f32.mrb[0].mxu0
    %v321 = vpop.f32.mrb[0].mxu0
    %322 = vdwg.mxu0
    %v325 = vunpack.c.l.b16 %v266
    %v326 = vunpack.c.l.b16 %v267
    %v327 = vpack.c.b16 %v326, %v325
    %329 = vmatprep.subr.bf16.mxu0 0
    %330 = vmatpush1.bf16.msra.mxu0 %v327
    %331 = vmatprep.subr.bf16.mxu0 0
    %332 = vmatpush1.bf16.msra.mxu0 0
    %333 = vmatprep.subr.bf16.mxu0 0
    %334 = vmatpush1.bf16.msra.mxu0 0
    %335 = vmatprep.subr.bf16.mxu0 0
    %336 = vmatpush1.bf16.msra.mxu0 0
    %337 = vmatprep.subr.bf16.mxu0 0
    %338 = vmatpush1.bf16.msra.mxu0 0
    %339 = vmatprep.subr.bf16.mxu0 0
    %340 = vmatpush1.bf16.msra.mxu0 0
    %341 = vmatprep.subr.bf16.mxu0 0
    %342 = vmatpush1.bf16.msra.mxu0 0
    %343 = vmatprep.subr.bf16.mxu0 0
    %344 = vmatpush1.bf16.msra.mxu0 0
    %345 = vmatprep.subr.bf16.mxu0 0
    %346 = vmatpush1.bf16.msra.mxu0 0
    %347 = vmatprep.subr.bf16.mxu0 0
    %348 = vmatpush1.bf16.msra.mxu0 0
    %349 = vmatprep.subr.bf16.mxu0 0
    %350 = vmatpush1.bf16.msra.mxu0 0
    %351 = vmatprep.subr.bf16.mxu0 0
    %352 = vmatpush1.bf16.msra.mxu0 0
    %353 = vmatprep.subr.bf16.mxu0 0
    %354 = vmatpush1.bf16.msra.mxu0 0
    %355 = vmatprep.subr.bf16.mxu0 0
    %356 = vmatpush1.bf16.msra.mxu0 0
    %357 = vmatprep.subr.bf16.mxu0 0
    %358 = vmatpush1.bf16.msra.mxu0 0
    %359 = vmatprep.subr.bf16.mxu0 0
    %360 = vmatpush1.bf16.msra.mxu0 0
    %361 = vmatprep.mubr.bf16.mxu0 0
    %362 = vmatmul.mubr.bf16.gmra.mrb[0].mxu0 %v281
    %v363 = vpop.f32.mrb[0].mxu0
    %v364 = vadd.f32 %v318, %v363
    %v365 = vpop.f32.mrb[0].mxu0
    %v366 = vpop.f32.mrb[0].mxu0
    %v367 = vpop.f32.mrb[0].mxu0
    %368 = vdwg.mxu0
    %370 = vrot.lane.b32.xlu0 %v114, 112
    %v371 = vpop.permute.xlu0 %370
    %v373 = vsel %vm125, %v371, 0
    %375 = vmatprep.subr.bf16.mxu0 0
    %376 = vmatpush1.bf16.msra.mxu0 %v327
    %377 = vmatprep.subr.bf16.mxu0 0
    %378 = vmatpush1.bf16.msra.mxu0 0
    %379 = vmatprep.subr.bf16.mxu0 0
    %380 = vmatpush1.bf16.msra.mxu0 0
    %381 = vmatprep.subr.bf16.mxu0 0
    %382 = vmatpush1.bf16.msra.mxu0 0
    %383 = vmatprep.subr.bf16.mxu0 0
    %384 = vmatpush1.bf16.msra.mxu0 0
    %385 = vmatprep.subr.bf16.mxu0 0
    %386 = vmatpush1.bf16.msra.mxu0 0
    %387 = vmatprep.subr.bf16.mxu0 0
    %388 = vmatpush1.bf16.msra.mxu0 0
    %389 = vmatprep.subr.bf16.mxu0 0
    %390 = vmatpush1.bf16.msra.mxu0 0
    %391 = vmatprep.subr.bf16.mxu0 0
    %392 = vmatpush1.bf16.msra.mxu0 0
    %393 = vmatprep.subr.bf16.mxu0 0
    %394 = vmatpush1.bf16.msra.mxu0 0
    %395 = vmatprep.subr.bf16.mxu0 0
    %396 = vmatpush1.bf16.msra.mxu0 0
    %397 = vmatprep.subr.bf16.mxu0 0
    %398 = vmatpush1.bf16.msra.mxu0 0
    %399 = vmatprep.subr.bf16.mxu0 0
    %400 = vmatpush1.bf16.msra.mxu0 0
    %401 = vmatprep.subr.bf16.mxu0 0
    %402 = vmatpush1.bf16.msra.mxu0 0
    %403 = vmatprep.subr.bf16.mxu0 0
    %404 = vmatpush1.bf16.msra.mxu0 0
    %405 = vmatprep.subr.bf16.mxu0 0
    %406 = vmatpush1.bf16.msra.mxu0 0
    %407 = vmatprep.mubr.bf16.mxu0 0
    %408 = vmatmul.mubr.bf16.gmra.mrb[0].mxu0 %v373
    %v409 = vpop.f32.mrb[0].mxu0
    %v410 = vadd.f32 0.0, %v409
    %v411 = vpop.f32.mrb[0].mxu0
    %v412 = vpop.f32.mrb[0].mxu0
    %v413 = vpop.f32.mrb[0].mxu0
    %414 = vdwg.mxu0
    %v415 = vadd.f32 %v364, %v410
    %v416 = vmul.f32 %v415, %v262
    %v417 = vld [vmem:[#allocation7] sm:$0xf]
    %v418 = vld [vmem:[#allocation7 + $0x4] sm:$0xf]
    %v419 = vld [vmem:[%s7] sm:$0xf]
    %v420 = vld [vmem:[%s7 + $0x4] sm:$0xf]
    %v423 = vunpack.c.l.b16 %v419
    %v424 = vunpack.c.l.b16 %v420
    %v425 = vpack.c.b16 %v424, %v423
    %427 = vmatprep.subr.bf16.mxu0 0
    %428 = vmatpush1.bf16.msra.mxu0 %v425
    %429 = vmatprep.subr.bf16.mxu0 0
    %430 = vmatpush1.bf16.msra.mxu0 0
    %431 = vmatprep.subr.bf16.mxu0 0
    %432 = vmatpush1.bf16.msra.mxu0 0
    %433 = vmatprep.subr.bf16.mxu0 0
    %434 = vmatpush1.bf16.msra.mxu0 0
    %435 = vmatprep.subr.bf16.mxu0 0
    %436 = vmatpush1.bf16.msra.mxu0 0
    %437 = vmatprep.subr.bf16.mxu0 0
    %438 = vmatpush1.bf16.msra.mxu0 0
    %439 = vmatprep.subr.bf16.mxu0 0
    %440 = vmatpush1.bf16.msra.mxu0 0
    %441 = vmatprep.subr.bf16.mxu0 0
    %442 = vmatpush1.bf16.msra.mxu0 0
    %443 = vmatprep.subr.bf16.mxu0 0
    %444 = vmatpush1.bf16.msra.mxu0 0
    %445 = vmatprep.subr.bf16.mxu0 0
    %446 = vmatpush1.bf16.msra.mxu0 0
    %447 = vmatprep.subr.bf16.mxu0 0
    %448 = vmatpush1.bf16.msra.mxu0 0
    %449 = vmatprep.subr.bf16.mxu0 0
    %450 = vmatpush1.bf16.msra.mxu0 0
    %451 = vmatprep.subr.bf16.mxu0 0
    %452 = vmatpush1.bf16.msra.mxu0 0
    %453 = vmatprep.subr.bf16.mxu0 0
    %454 = vmatpush1.bf16.msra.mxu0 0
    %455 = vmatprep.subr.bf16.mxu0 0
    %456 = vmatpush1.bf16.msra.mxu0 0
    %457 = vmatprep.subr.bf16.mxu0 0
    %458 = vmatpush1.bf16.msra.mxu0 0
    %459 = vmatprep.mubr.bf16.mxu0 0
    %460 = vmatmul.mubr.bf16.gmra.mrb[0].mxu0 %v127
    %v461 = vpop.f32.mrb[0].mxu0
    %v462 = vadd.f32 0.0, %v461
    %v463 = vpop.f32.mrb[0].mxu0
    %v464 = vpop.f32.mrb[0].mxu0
    %v465 = vpop.f32.mrb[0].mxu0
    %466 = vdwg.mxu0
    %v469 = vunpack.c.l.b16 %v417
    %v470 = vunpack.c.l.b16 %v418
    %v471 = vpack.c.b16 %v470, %v469
    %473 = vmatprep.subr.bf16.mxu0 0
    %474 = vmatpush1.bf16.msra.mxu0 %v471
    %475 = vmatprep.subr.bf16.mxu0 0
    %476 = vmatpush1.bf16.msra.mxu0 0
    %477 = vmatprep.subr.bf16.mxu0 0
    %478 = vmatpush1.bf16.msra.mxu0 0
    %479 = vmatprep.subr.bf16.mxu0 0
    %480 = vmatpush1.bf16.msra.mxu0 0
    %481 = vmatprep.subr.bf16.mxu0 0
    %482 = vmatpush1.bf16.msra.mxu0 0
    %483 = vmatprep.subr.bf16.mxu0 0
    %484 = vmatpush1.bf16.msra.mxu0 0
    %485 = vmatprep.subr.bf16.mxu0 0
    %486 = vmatpush1.bf16.msra.mxu0 0
    %487 = vmatprep.subr.bf16.mxu0 0
    %488 = vmatpush1.bf16.msra.mxu0 0
    %489 = vmatprep.subr.bf16.mxu0 0
    %490 = vmatpush1.bf16.msra.mxu0 0
    %491 = vmatprep.subr.bf16.mxu0 0
    %492 = vmatpush1.bf16.msra.mxu0 0
    %493 = vmatprep.subr.bf16.mxu0 0
    %494 = vmatpush1.bf16.msra.mxu0 0
    %495 = vmatprep.subr.bf16.mxu0 0
    %496 = vmatpush1.bf16.msra.mxu0 0
    %497 = vmatprep.subr.bf16.mxu0 0
    %498 = vmatpush1.bf16.msra.mxu0 0
    %499 = vmatprep.subr.bf16.mxu0 0
    %500 = vmatpush1.bf16.msra.mxu0 0
    %501 = vmatprep.subr.bf16.mxu0 0
    %502 = vmatpush1.bf16.msra.mxu0 0
    %503 = vmatprep.subr.bf16.mxu0 0
    %504 = vmatpush1.bf16.msra.mxu0 0
    %505 = vmatprep.mubr.bf16.mxu0 0
    %506 = vmatmul.mubr.bf16.gmra.mrb[0].mxu0 %v127
    %v507 = vpop.f32.mrb[0].mxu0
    %v508 = vadd.f32 %v462, %v507
    %v509 = vpop.f32.mrb[0].mxu0
    %v510 = vpop.f32.mrb[0].mxu0
    %v511 = vpop.f32.mrb[0].mxu0
    %512 = vdwg.mxu0
    %513 = vmatprep.subr.bf16.mxu0 0
    %514 = vmatpush1.bf16.msra.mxu0 %v471
    %515 = vmatprep.subr.bf16.mxu0 0
    %516 = vmatpush1.bf16.msra.mxu0 0
    %517 = vmatprep.subr.bf16.mxu0 0
    %518 = vmatpush1.bf16.msra.mxu0 0
    %519 = vmatprep.subr.bf16.mxu0 0
    %520 = vmatpush1.bf16.msra.mxu0 0
    %521 = vmatprep.subr.bf16.mxu0 0
    %522 = vmatpush1.bf16.msra.mxu0 0
    %523 = vmatprep.subr.bf16.mxu0 0
    %524 = vmatpush1.bf16.msra.mxu0 0
    %525 = vmatprep.subr.bf16.mxu0 0
    %526 = vmatpush1.bf16.msra.mxu0 0
    %527 = vmatprep.subr.bf16.mxu0 0
    %528 = vmatpush1.bf16.msra.mxu0 0
    %529 = vmatprep.subr.bf16.mxu0 0
    %530 = vmatpush1.bf16.msra.mxu0 0
    %531 = vmatprep.subr.bf16.mxu0 0
    %532 = vmatpush1.bf16.msra.mxu0 0
    %533 = vmatprep.subr.bf16.mxu0 0
    %534 = vmatpush1.bf16.msra.mxu0 0
    %535 = vmatprep.subr.bf16.mxu0 0
    %536 = vmatpush1.bf16.msra.mxu0 0
    %537 = vmatprep.subr.bf16.mxu0 0
    %538 = vmatpush1.bf16.msra.mxu0 0
    %539 = vmatprep.subr.bf16.mxu0 0
    %540 = vmatpush1.bf16.msra.mxu0 0
    %541 = vmatprep.subr.bf16.mxu0 0
    %542 = vmatpush1.bf16.msra.mxu0 0
    %543 = vmatprep.subr.bf16.mxu0 0
    %544 = vmatpush1.bf16.msra.mxu0 0
    %545 = vmatprep.mubr.bf16.mxu0 0
    %546 = vmatmul.mubr.bf16.gmra.mrb[0].mxu0 %v216
    %v547 = vpop.f32.mrb[0].mxu0
    %v548 = vadd.f32 0.0, %v547
    %v549 = vpop.f32.mrb[0].mxu0
    %v550 = vpop.f32.mrb[0].mxu0
    %v551 = vpop.f32.mrb[0].mxu0
    %552 = vdwg.mxu0
    %v553 = vadd.f32 %v508, %v548
    %v554 = vmul.f32 %v553, %v262
    %s555 = scalar_lea.vmem [#allocation7], 8
    %v556 = vld [vmem:[%s555] sm:$0xf]
    %v557 = vld [vmem:[%s555 + $0x4] sm:$0xf]
    %s558 = scalar_lea.vmem %s7, 8
    %v559 = vld [vmem:[%s558] sm:$0xf]
    %v560 = vld [vmem:[%s558 + $0x4] sm:$0xf]
    %v563 = vunpack.c.l.b16 %v559
    %v564 = vunpack.c.l.b16 %v560
    %v565 = vpack.c.b16 %v564, %v563
    %567 = vmatprep.subr.bf16.mxu0 0
    %568 = vmatpush1.bf16.msra.mxu0 %v565
    %569 = vmatprep.subr.bf16.mxu0 0
    %570 = vmatpush1.bf16.msra.mxu0 0
    %571 = vmatprep.subr.bf16.mxu0 0
    %572 = vmatpush1.bf16.msra.mxu0 0
    %573 = vmatprep.subr.bf16.mxu0 0
    %574 = vmatpush1.bf16.msra.mxu0 0
    %575 = vmatprep.subr.bf16.mxu0 0
    %576 = vmatpush1.bf16.msra.mxu0 0
    %577 = vmatprep.subr.bf16.mxu0 0
    %578 = vmatpush1.bf16.msra.mxu0 0
    %579 = vmatprep.subr.bf16.mxu0 0
    %580 = vmatpush1.bf16.msra.mxu0 0
    %581 = vmatprep.subr.bf16.mxu0 0
    %582 = vmatpush1.bf16.msra.mxu0 0
    %583 = vmatprep.subr.bf16.mxu0 0
    %584 = vmatpush1.bf16.msra.mxu0 0
    %585 = vmatprep.subr.bf16.mxu0 0
    %586 = vmatpush1.bf16.msra.mxu0 0
    %587 = vmatprep.subr.bf16.mxu0 0
    %588 = vmatpush1.bf16.msra.mxu0 0
    %589 = vmatprep.subr.bf16.mxu0 0
    %590 = vmatpush1.bf16.msra.mxu0 0
    %591 = vmatprep.subr.bf16.mxu0 0
    %592 = vmatpush1.bf16.msra.mxu0 0
    %593 = vmatprep.subr.bf16.mxu0 0
    %594 = vmatpush1.bf16.msra.mxu0 0
    %595 = vmatprep.subr.bf16.mxu0 0
    %596 = vmatpush1.bf16.msra.mxu0 0
    %597 = vmatprep.subr.bf16.mxu0 0
    %598 = vmatpush1.bf16.msra.mxu0 0
    %599 = vmatprep.mubr.bf16.mxu0 0
    %600 = vmatmul.mubr.bf16.gmra.mrb[0].mxu0 %v281
    %v601 = vpop.f32.mrb[0].mxu0
    %v602 = vadd.f32 0.0, %v601
    %v603 = vpop.f32.mrb[0].mxu0
    %v604 = vpop.f32.mrb[0].mxu0
    %v605 = vpop.f32.mrb[0].mxu0
    %606 = vdwg.mxu0
    %v609 = vunpack.c.l.b16 %v556
    %v610 = vunpack.c.l.b16 %v557
    %v611 = vpack.c.b16 %v610, %v609
    %613 = vmatprep.subr.bf16.mxu0 0
    %614 = vmatpush1.bf16.msra.mxu0 %v611
    %615 = vmatprep.subr.bf16.mxu0 0
    %616 = vmatpush1.bf16.msra.mxu0 0
    %617 = vmatprep.subr.bf16.mxu0 0
    %618 = vmatpush1.bf16.msra.mxu0 0
    %619 = vmatprep.subr.bf16.mxu0 0
    %620 = vmatpush1.bf16.msra.mxu0 0
    %621 = vmatprep.subr.bf16.mxu0 0
    %622 = vmatpush1.bf16.msra.mxu0 0
    %623 = vmatprep.subr.bf16.mxu0 0
    %624 = vmatpush1.bf16.msra.mxu0 0
    %625 = vmatprep.subr.bf16.mxu0 0
    %626 = vmatpush1.bf16.msra.mxu0 0
    %627 = vmatprep.subr.bf16.mxu0 0
    %628 = vmatpush1.bf16.msra.mxu0 0
    %629 = vmatprep.subr.bf16.mxu0 0
    %630 = vmatpush1.bf16.msra.mxu0 0
    %631 = vmatprep.subr.bf16.mxu0 0
    %632 = vmatpush1.bf16.msra.mxu0 0
    %633 = vmatprep.subr.bf16.mxu0 0
    %634 = vmatpush1.bf16.msra.mxu0 0
    %635 = vmatprep.subr.bf16.mxu0 0
    %636 = vmatpush1.bf16.msra.mxu0 0
    %637 = vmatprep.subr.bf16.mxu0 0
    %638 = vmatpush1.bf16.msra.mxu0 0
    %639 = vmatprep.subr.bf16.mxu0 0
    %640 = vmatpush1.bf16.msra.mxu0 0
    %641 = vmatprep.subr.bf16.mxu0 0
    %642 = vmatpush1.bf16.msra.mxu0 0
    %643 = vmatprep.subr.bf16.mxu0 0
    %644 = vmatpush1.bf16.msra.mxu0 0
    %645 = vmatprep.mubr.bf16.mxu0 0
    %646 = vmatmul.mubr.bf16.gmra.mrb[0].mxu0 %v281
    %v647 = vpop.f32.mrb[0].mxu0
    %v648 = vadd.f32 %v602, %v647
    %v649 = vpop.f32.mrb[0].mxu0
    %v650 = vpop.f32.mrb[0].mxu0
    %v651 = vpop.f32.mrb[0].mxu0
    %652 = vdwg.mxu0
    %653 = vmatprep.subr.bf16.mxu0 0
    %654 = vmatpush1.bf16.msra.mxu0 %v611
    %655 = vmatprep.subr.bf16.mxu0 0
    %656 = vmatpush1.bf16.msra.mxu0 0
    %657 = vmatprep.subr.bf16.mxu0 0
    %658 = vmatpush1.bf16.msra.mxu0 0
    %659 = vmatprep.subr.bf16.mxu0 0
    %660 = vmatpush1.bf16.msra.mxu0 0
    %661 = vmatprep.subr.bf16.mxu0 0
    %662 = vmatpush1.bf16.msra.mxu0 0
    %663 = vmatprep.subr.bf16.mxu0 0
    %664 = vmatpush1.bf16.msra.mxu0 0
    %665 = vmatprep.subr.bf16.mxu0 0
    %666 = vmatpush1.bf16.msra.mxu0 0
    %667 = vmatprep.subr.bf16.mxu0 0
    %668 = vmatpush1.bf16.msra.mxu0 0
    %669 = vmatprep.subr.bf16.mxu0 0
    %670 = vmatpush1.bf16.msra.mxu0 0
    %671 = vmatprep.subr.bf16.mxu0 0
    %672 = vmatpush1.bf16.msra.mxu0 0
    %673 = vmatprep.subr.bf16.mxu0 0
    %674 = vmatpush1.bf16.msra.mxu0 0
    %675 = vmatprep.subr.bf16.mxu0 0
    %676 = vmatpush1.bf16.msra.mxu0 0
    %677 = vmatprep.subr.bf16.mxu0 0
    %678 = vmatpush1.bf16.msra.mxu0 0
    %679 = vmatprep.subr.bf16.mxu0 0
    %680 = vmatpush1.bf16.msra.mxu0 0
    %681 = vmatprep.subr.bf16.mxu0 0
    %682 = vmatpush1.bf16.msra.mxu0 0
    %683 = vmatprep.subr.bf16.mxu0 0
    %684 = vmatpush1.bf16.msra.mxu0 0
    %685 = vmatprep.mubr.bf16.mxu0 0
    %686 = vmatmul.mubr.bf16.gmra.mrb[0].mxu0 %v373
    %v687 = vpop.f32.mrb[0].mxu0
    %v688 = vadd.f32 0.0, %v687
    %v689 = vpop.f32.mrb[0].mxu0
    %v690 = vpop.f32.mrb[0].mxu0
    %v691 = vpop.f32.mrb[0].mxu0
    %692 = vdwg.mxu0
    %v693 = vadd.f32 %v648, %v688
    %v694 = vmul.f32 %v693, %v262
    %v695 = vpack.c.bf16 %v264, %v264
    %v696 = vunpack.c.l.bf16 %v695
    %v697 = vsub.f32 %v264, %v696
    %v698 = vpack.c.bf16 %v697, %v697
    %v699 = vpack.c.bf16 %v416, %v416
    %v700 = vunpack.c.l.bf16 %v699
    %v701 = vsub.f32 %v416, %v700
    %v702 = vpack.c.bf16 %v701, %v701
    %v703 = vpack.c.bf16 %v554, %v554
    %v704 = vunpack.c.l.bf16 %v703
    %v705 = vsub.f32 %v554, %v704
    %v706 = vpack.c.bf16 %v705, %v705
    %v707 = vpack.c.bf16 %v694, %v694
    %v708 = vunpack.c.l.bf16 %v707
    %v709 = vsub.f32 %v694, %v708
    %v710 = vpack.c.bf16 %v709, %v709
    %vm711 = vcmask 125952
    %712 = vst.msk [vmem:[#allocation9] sm:$0xf] %vm711, %v695
    %s713 = scalar_lea.vmem [#allocation9], 4
    %714 = vst.msk [vmem:[%s713] sm:$0xf] %vm711, %v699
    %715 = vst.msk [vmem:[#allocation11] sm:$0xf] %vm711, %v698
    %s716 = scalar_lea.vmem [#allocation11], 4
    %717 = vst.msk [vmem:[%s716] sm:$0xf] %vm711, %v702
    %718 = vst.msk [vmem:[#allocation12] sm:$0xf] %vm711, %v703
    %s719 = scalar_lea.vmem [#allocation12], 4
    %720 = vst.msk [vmem:[%s719] sm:$0xf] %vm711, %v707
    %721 = vst.msk [vmem:[#allocation14] sm:$0xf] %vm711, %v706
    %s722 = scalar_lea.vmem [#allocation14], 4
    %723 = vst.msk [vmem:[%s722] sm:$0xf] %vm711, %v710
    // Predicated region
    $region46: #{tpu_custom_call.1} parent=1 // pred_check
      _
    $region47: #{tpu_custom_call.1} parent=1 // pred_check_branch
      %725 = sbr.rel (0) target = $region49
    $region48: #{tpu_custom_call.1} parent=1 // pred_region
      %s727 = ssub.s32 128, 128
      %728 = vsyncadd [#allocation4], %s727
      %s730 = sshll.u32 [#allocation8], 4
      %s731 = int_to_ptr.vmem [resolvable:$true] %s730
      %733 = dma.vmem_to_hbm [thread:$0]  %s731, 128, %s8, [#allocation4]
    $region49: #{tpu_custom_call.1} parent=1 // pred_fallthru
      _
    // Predicated region
    $region50: #{tpu_custom_call.1} parent=1 // pred_check
      _
    $region51: #{tpu_custom_call.1} parent=1 // pred_check_branch
      %735 = sbr.rel (0) target = $region53
    $region52: #{tpu_custom_call.1} parent=1 // pred_region
      %s737 = ssub.s32 128, 128
      %738 = vsyncadd [#allocation10], %s737
      %s739 = sshll.u32 [#allocation9], 4
      %s740 = int_to_ptr.vmem [resolvable:$true] %s739
      %745 = dma.vmem_to_hbm [thread:$0]  %s740, 128, %s9, [#allocation10], 64, 64, 4
    $region53: #{tpu_custom_call.1} parent=1 // pred_fallthru
      _
    // Predicated region
    $region54: #{tpu_custom_call.1} parent=1 // pred_check
      _
    $region55: #{tpu_custom_call.1} parent=1 // pred_check_branch
      %747 = sbr.rel (0) target = $region57
    $region56: #{tpu_custom_call.1} parent=1 // pred_region
      %s749 = ssub.s32 128, 128
      %750 = vsyncadd [#allocation10], %s749
      %s751 = sshll.u32 [#allocation11], 4
      %s752 = int_to_ptr.vmem [resolvable:$true] %s751
      %757 = dma.vmem_to_hbm [thread:$0]  %s752, 128, %s10, [#allocation10], 64, 64, 4
    $region57: #{tpu_custom_call.1} parent=1 // pred_fallthru
      _
    // Predicated region
    $region58: #{tpu_custom_call.1} parent=1 // pred_check
      _
    $region59: #{tpu_custom_call.1} parent=1 // pred_check_branch
      %759 = sbr.rel (0) target = $region61
    $region60: #{tpu_custom_call.1} parent=1 // pred_region
      %s761 = ssub.s32 128, 128
      %762 = vsyncadd [#allocation13], %s761
      %s763 = sshll.u32 [#allocation12], 4
      %s764 = int_to_ptr.vmem [resolvable:$true] %s763
      %769 = dma.vmem_to_hbm [thread:$0]  %s764, 128, %s11, [#allocation13], 64, 64, 4
    $region61: #{tpu_custom_call.1} parent=1 // pred_fallthru
      _
    // Predicated region
    $region62: #{tpu_custom_call.1} parent=1 // pred_check
      _
    $region63: #{tpu_custom_call.1} parent=1 // pred_check_branch
      %771 = sbr.rel (0) target = $region65
    $region64: #{tpu_custom_call.1} parent=1 // pred_region
      %s773 = ssub.s32 128, 128
      %774 = vsyncadd [#allocation13], %s773
      %s775 = sshll.u32 [#allocation14], 4
      %s776 = int_to_ptr.vmem [resolvable:$true] %s775
      %781 = dma.vmem_to_hbm [thread:$0]  %s776, 128, %s12, [#allocation13], 64, 64, 4
    $region65: #{tpu_custom_call.1} parent=1 // pred_fallthru
      _
    // Predicated region
    $region66: #{tpu_custom_call.1} parent=1 // pred_check
      _
    $region67: #{tpu_custom_call.1} parent=1 // pred_check_branch
      %783 = sbr.rel (0) target = $region69
    $region68: #{tpu_custom_call.1} parent=1 // pred_region
      %784 = dma.done [#allocation4], 128
    $region69: #{tpu_custom_call.1} parent=1 // pred_fallthru
      _
    // Predicated region
    $region70: #{tpu_custom_call.1} parent=1 // pred_check
      _
    $region71: #{tpu_custom_call.1} parent=1 // pred_check_branch
      %786 = sbr.rel (0) target = $region73
    $region72: #{tpu_custom_call.1} parent=1 // pred_region
      %787 = dma.done [#allocation10], 128
    $region73: #{tpu_custom_call.1} parent=1 // pred_fallthru
      _
    // Predicated region
    $region74: #{tpu_custom_call.1} parent=1 // pred_check
      _
    $region75: #{tpu_custom_call.1} parent=1 // pred_check_branch
      %789 = sbr.rel (0) target = $region77
    $region76: #{tpu_custom_call.1} parent=1 // pred_region
      %790 = dma.done [#allocation10], 128
    $region77: #{tpu_custom_call.1} parent=1 // pred_fallthru
      _
    // Predicated region
    $region78: #{tpu_custom_call.1} parent=1 // pred_check
      _
    $region79: #{tpu_custom_call.1} parent=1 // pred_check_branch
      %792 = sbr.rel (0) target = $region81
    $region80: #{tpu_custom_call.1} parent=1 // pred_region
      %793 = dma.done [#allocation13], 128
    $region81: #{tpu_custom_call.1} parent=1 // pred_fallthru
      _
    // Predicated region
    $region82: #{tpu_custom_call.1} parent=1 // pred_check
      _
    $region83: #{tpu_custom_call.1} parent=1 // pred_check_branch
      %795 = sbr.rel (0) target = $region85
    $region84: #{tpu_custom_call.1} parent=1 // pred_region
      %796 = dma.done [#allocation13], 128
    $region85: #{tpu_custom_call.1} parent=1 // pred_fallthru
      _
    %797 = vsyncpa [#allocation3], 1
    %798 = vsyncpa [#allocation6], 1
    %799 = vsyncpa [#allocation4], 1
    %800 = vsyncpa [#allocation10], 1
    %801 = vsyncpa [#allocation13], 1

</llo_original>
